<compile_context>
chip_gen: v7x
topology: tpu7x:2x2x1
jax: 0.10.0
libtpu: 0.0.40
codegen_flags: <defaults>
</compile_context>

<pallas_src>
import functools

import numpy as np
import jax
import jax.numpy as jnp
from jax.experimental import pallas as pl
from jax.experimental.pallas import tpu as pltpu


OUT_W = 128  # lane-dense combined output width (>= hidden_dim + 1)


def _mlp_base_kernel(x_ref, w1_ref, b1_ref, w2_ref, b2_ref, wv_ref, bv_ref,
                     out_ref, *, hidden_dim):
    """One batch tile: fused actor||critic trunk + value head.

    x_ref  : (TB, in_dim)
    w1_ref : (in_dim, 2H) = [wa0 | wc0]          b1_ref: (1, 2H)
    w2_ref : (2H, 2H)     = blockdiag(wa1, wc1)  b2_ref: (1, 2H)
    wv_ref : (1, 2H)      = [0 | wv_row]  (zero-padded value head)
    bv_ref : (1, 1)
    out_ref: (TB, OUT_W)  = [hidden_actor | value broadcast]
    """
    x = x_ref[...]

    # layer 1, actor+critic fused: one (TB, in) @ (in, 2H) MXU matmul.
    h = jnp.tanh(jnp.dot(x, w1_ref[...], preferred_element_type=jnp.float32)
                 + b1_ref[...])
    # layer 2, block-diagonal fused weight: one (TB, 2H) @ (2H, 2H) matmul.
    h = jnp.tanh(jnp.dot(h, w2_ref[...], preferred_element_type=jnp.float32)
                 + b2_ref[...])

    # value head: VPU multiply + XLU lane reduce (avoids a wasteful N=1 matmul).
    v = jnp.sum(h * wv_ref[...], axis=-1, keepdims=True) + bv_ref[...]

    # lane-dense output slab: [h_actor | v broadcast over remaining lanes].
    tb = out_ref.shape[0]
    pad_w = out_ref.shape[1] - hidden_dim
    out_ref[...] = jnp.concatenate(
        [h[:, :hidden_dim], jnp.broadcast_to(v, (tb, pad_w))], axis=-1
    ).astype(out_ref.dtype)


def mlp_base_forward(x, fused, *, block_b=512):
    """Returns (value (B, 1), hidden_actor (B, H)) — same as MLPBase.forward."""
    B, in_dim = x.shape
    H = fused["w1"].shape[1] // 2
    assert OUT_W >= H + 1

    # batch tile: multiple of 8 sublanes, capped at block_b rows.
    TB = min(block_b, ((B + 7) // 8) * 8)
    B_pad = pl.cdiv(B, TB) * TB
    if B_pad != B:
        x = jnp.pad(x, ((0, B_pad - B), (0, 0)))
    grid = (B_pad // TB,)

    kernel = functools.partial(_mlp_base_kernel, hidden_dim=H)

    def const(shape):  # weights/biases: same block every grid step (VMEM-resident)
        return pl.BlockSpec(shape, lambda i: (0, 0))

    out = pl.pallas_call(
        kernel,
        out_shape=jax.ShapeDtypeStruct((B_pad, OUT_W), x.dtype),
        grid_spec=pltpu.PrefetchScalarGridSpec(
            num_scalar_prefetch=0,
            grid=grid,
            in_specs=[
                pl.BlockSpec((TB, in_dim), lambda i: (i, 0)),   # x: streamed
                const(fused["w1"].shape),
                const(fused["b1"].shape),
                const(fused["w2"].shape),
                const(fused["b2"].shape),
                const(fused["wv"].shape),
                const(fused["bv"].shape),
            ],
            out_specs=pl.BlockSpec((TB, OUT_W), lambda i: (i, 0)),
        ),
        compiler_params=pltpu.CompilerParams(
            dimension_semantics=("parallel",)),
    )(x, fused["w1"], fused["b1"], fused["w2"], fused["b2"],
      fused["wv"], fused["bv"])

    value = out[:B, H:H + 1]
    hidden_actor = out[:B, :H]
    return value, hidden_actor


# ---------------- deterministic parameter init (mirrors init_/orthogonal_) ----------------
def _orthogonal(rng, rows, cols, gain):
    """Orthogonal init like torch.nn.init.orthogonal_ on a (rows, cols) weight."""
    a = rng.standard_normal((max(rows, cols), min(rows, cols))).astype(np.float64)
    q, r = np.linalg.qr(a)
    q = q * np.sign(np.diag(r))          # deterministic / unique
    if rows < cols:
        q = q.T
    return (gain * q[:rows, :cols]).astype(np.float32)


def make_params(in_dim, hidden_dim, seed=0):
    rng = np.random.default_rng(seed)
    gain = float(np.sqrt(2.0))

    def linear(in_d, out_d):
        w_pt = _orthogonal(rng, out_d, in_d, gain)          # PyTorch (out, in)
        w = jnp.asarray(w_pt.T)                             # kernel layout (in, out)
        b = jnp.zeros((1, out_d), dtype=jnp.float32)        # constant_(0)
        return w, b

    p = {}
    p["wa0"], p["ba0"] = linear(in_dim, hidden_dim)
    p["wa1"], p["ba1"] = linear(hidden_dim, hidden_dim)
    p["wc0"], p["bc0"] = linear(in_dim, hidden_dim)
    p["wc1"], p["bc1"] = linear(hidden_dim, hidden_dim)
    p["wv"],  p["bv"]  = linear(hidden_dim, 1)
    return p


def fuse_params(p):
    """Pre-fuse actor+critic weights for the kernel (done once, outside the hot path)."""
    H = p["wa1"].shape[1]
    z = jnp.zeros((H, H), jnp.float32)
    return {
        "w1": jnp.concatenate([p["wa0"], p["wc0"]], axis=1),            # (in, 2H)
        "b1": jnp.concatenate([p["ba0"], p["bc0"]], axis=1),            # (1, 2H)
        "w2": jnp.concatenate(
            [jnp.concatenate([p["wa1"], z], axis=1),
             jnp.concatenate([z, p["wc1"]], axis=1)], axis=0),          # (2H, 2H)
        "b2": jnp.concatenate([p["ba1"], p["bc1"]], axis=1),            # (1, 2H)
        "wv": jnp.concatenate([jnp.zeros((1, H), jnp.float32),
                               p["wv"].T], axis=1),                     # (1, 2H)
        "bv": p["bv"],                                                  # (1, 1)
    }


def _reference(x, p):
    h = jnp.tanh(x @ p["wa0"] + p["ba0"])
    h = jnp.tanh(h @ p["wa1"] + p["ba1"])
    c = jnp.tanh(x @ p["wc0"] + p["bc0"])
    c = jnp.tanh(c @ p["wc1"] + p["bc1"])
    v = c @ p["wv"] + p["bv"]
    return v, h


if __name__ == "__main__":
    in_dim, hidden_dim = 32, 32
    params = make_params(in_dim, hidden_dim, seed=0)
    fused = fuse_params(params)

    # --- small batch (single grid step) ---
    batch = 8
    x = jax.random.normal(jax.random.PRNGKey(0), (batch, in_dim), dtype=jnp.float32)
    value, hidden_actor = mlp_base_forward(x, fused)
    jax.block_until_ready((value, hidden_actor))

    v_ref, h_ref = _reference(x, params)
    assert value.shape == (batch, 1) and hidden_actor.shape == (batch, hidden_dim)
    np.testing.assert_allclose(np.asarray(value), np.asarray(v_ref), atol=1e-2, rtol=1e-2)
    np.testing.assert_allclose(np.asarray(hidden_actor), np.asarray(h_ref), atol=1e-2, rtol=1e-2)

    # --- larger batch exercising the multi-step grid + padding path ---
    xb = jax.random.normal(jax.random.PRNGKey(1), (200, in_dim), dtype=jnp.float32)
    value_b, hidden_b = mlp_base_forward(xb, fused, block_b=64)
    jax.block_until_ready((value_b, hidden_b))
    v_ref_b, h_ref_b = _reference(xb, params)
    np.testing.assert_allclose(np.asarray(value_b), np.asarray(v_ref_b), atol=1e-2, rtol=1e-2)
    np.testing.assert_allclose(np.asarray(hidden_b), np.asarray(h_ref_b), atol=1e-2, rtol=1e-2)

    print("KERNEL_OK")
</pallas_src>

<mosaic_0001>
module attributes {stable_mosaic.version = 11 : i64} {
  func.func @_mlp_base_kernel(%arg0: i32, %arg1: memref<8x32xf32, #tpu.memory_space<vmem>>, %arg2: memref<32x64xf32, #tpu.memory_space<vmem>>, %arg3: memref<1x64xf32, #tpu.memory_space<vmem>>, %arg4: memref<64x64xf32, #tpu.memory_space<vmem>>, %arg5: memref<1x64xf32, #tpu.memory_space<vmem>>, %arg6: memref<1x64xf32, #tpu.memory_space<vmem>>, %arg7: memref<1x1xf32, #tpu.memory_space<vmem>>, %arg8: memref<8x128xf32, #tpu.memory_space<vmem>>) attributes {dimension_semantics = [#tpu.dimension_semantics<parallel>], iteration_bounds = array<i64: 1>, scalar_prefetch = 0 : i64, scratch_operands = 0 : i64, tpu.core_type = #tpu.core_type<tc>, window_params = [{transform_indices = @transform_0, window_bounds = array<i64: 8, 32>}, {pipeline_mode = #tpu.pipeline_mode<synchronous>, transform_indices = @transform_1, window_bounds = array<i64: 32, 64>}, {pipeline_mode = #tpu.pipeline_mode<synchronous>, transform_indices = @transform_2, window_bounds = array<i64: 1, 64>}, {pipeline_mode = #tpu.pipeline_mode<synchronous>, transform_indices = @transform_3, window_bounds = array<i64: 64, 64>}, {pipeline_mode = #tpu.pipeline_mode<synchronous>, transform_indices = @transform_4, window_bounds = array<i64: 1, 64>}, {pipeline_mode = #tpu.pipeline_mode<synchronous>, transform_indices = @transform_5, window_bounds = array<i64: 1, 64>}, {pipeline_mode = #tpu.pipeline_mode<synchronous>, transform_indices = @transform_6, window_bounds = array<i64: 1, 1>}, {transform_indices = @transform_7, window_bounds = array<i64: 8, 128>}]} {
    %c0 = arith.constant 0 : index
    %c0_0 = arith.constant 0 : index
    %0 = vector.load %arg1[%c0, %c0_0] : memref<8x32xf32, #tpu.memory_space<vmem>>, vector<8x32xf32>
    %c0_1 = arith.constant 0 : index
    %c0_2 = arith.constant 0 : index
    %1 = vector.load %arg2[%c0_1, %c0_2] : memref<32x64xf32, #tpu.memory_space<vmem>>, vector<32x64xf32>
    %cst = arith.constant dense<0.000000e+00> : vector<8x64xf32>
    %2 = tpu.matmul %0, %1, %cst {dimension_numbers = #tpu.dot_dimension_numbers<[1], [0], [0], [1], [0, 0, 1, 1], [], []>} : vector<8x32xf32>, vector<32x64xf32>, vector<8x64xf32> -> vector<8x64xf32>
    %c0_3 = arith.constant 0 : index
    %c0_4 = arith.constant 0 : index
    %3 = vector.load %arg3[%c0_3, %c0_4] : memref<1x64xf32, #tpu.memory_space<vmem>>, vector<1x64xf32>
    %4 = vector.broadcast %3 : vector<1x64xf32> to vector<8x64xf32>
    %5 = arith.addf %2, %4 : vector<8x64xf32>
    %6 = math.tanh %5 : vector<8x64xf32>
    %c0_5 = arith.constant 0 : index
    %c0_6 = arith.constant 0 : index
    %7 = vector.load %arg4[%c0_5, %c0_6] : memref<64x64xf32, #tpu.memory_space<vmem>>, vector<64x64xf32>
    %cst_7 = arith.constant dense<0.000000e+00> : vector<8x64xf32>
    %8 = tpu.matmul %6, %7, %cst_7 {dimension_numbers = #tpu.dot_dimension_numbers<[1], [0], [0], [1], [0, 0, 1, 1], [], []>} : vector<8x64xf32>, vector<64x64xf32>, vector<8x64xf32> -> vector<8x64xf32>
    %c0_8 = arith.constant 0 : index
    %c0_9 = arith.constant 0 : index
    %9 = vector.load %arg5[%c0_8, %c0_9] : memref<1x64xf32, #tpu.memory_space<vmem>>, vector<1x64xf32>
    %10 = vector.broadcast %9 : vector<1x64xf32> to vector<8x64xf32>
    %11 = arith.addf %8, %10 : vector<8x64xf32>
    %12 = math.tanh %11 : vector<8x64xf32>
    %c0_10 = arith.constant 0 : index
    %c0_11 = arith.constant 0 : index
    %13 = vector.load %arg6[%c0_10, %c0_11] : memref<1x64xf32, #tpu.memory_space<vmem>>, vector<1x64xf32>
    %14 = vector.broadcast %13 : vector<1x64xf32> to vector<8x64xf32>
    %15 = arith.mulf %12, %14 : vector<8x64xf32>
    %cst_12 = arith.constant dense<0.000000e+00> : vector<8xf32>
    %16 = vector.multi_reduction <add>, %15, %cst_12 [1] : vector<8x64xf32> to vector<8xf32>
    %17 = vector.shape_cast %16 : vector<8xf32> to vector<8x1xf32>
    %c0_13 = arith.constant 0 : index
    %c0_14 = arith.constant 0 : index
    %18 = vector.load %arg7[%c0_13, %c0_14] : memref<1x1xf32, #tpu.memory_space<vmem>>, vector<1x1xf32>
    %19 = vector.broadcast %18 : vector<1x1xf32> to vector<8x1xf32>
    %20 = arith.addf %17, %19 : vector<8x1xf32>
    %21 = vector.extract_strided_slice %12 {offsets = [0, 0], sizes = [8, 32], strides = [1, 1]} : vector<8x64xf32> to vector<8x32xf32>
    %22 = vector.shape_cast %20 : vector<8x1xf32> to vector<8x1xf32>
    %23 = vector.broadcast %22 : vector<8x1xf32> to vector<8x96xf32>
    %24 = tpu.concatenate %21, %23 in 1 : vector<8x32xf32>, vector<8x96xf32> -> vector<8x128xf32>
    %c0_15 = arith.constant 0 : index
    %c0_16 = arith.constant 0 : index
    %25 = vector.load %arg8[%c0_15, %c0_16] : memref<8x128xf32, #tpu.memory_space<vmem>>, vector<8x128xf32>
    tpu.vector_store %arg8[%c0_15, %c0_16], %24 {strides = array<i32>} : memref<8x128xf32, #tpu.memory_space<vmem>>, vector<8x128xf32>,
    return
  }
  func.func @transform_0(%arg0: i32) -> (i32, i32) {
    %c0_i32 = arith.constant 0 : i32
    %c0_i32_0 = arith.constant 0 : i32
    return %arg0, %c0_i32 : i32, i32
  }
  func.func @transform_1(%arg0: i32) -> (i32, i32) {
    %c0_i32 = arith.constant 0 : i32
    %c0_i32_0 = arith.constant 0 : i32
    %c0_i32_1 = arith.constant 0 : i32
    return %c0_i32, %c0_i32_0 : i32, i32
  }
  func.func @transform_2(%arg0: i32) -> (i32, i32) {
    %c0_i32 = arith.constant 0 : i32
    %c0_i32_0 = arith.constant 0 : i32
    %c0_i32_1 = arith.constant 0 : i32
    return %c0_i32, %c0_i32_0 : i32, i32
  }
  func.func @transform_3(%arg0: i32) -> (i32, i32) {
    %c0_i32 = arith.constant 0 : i32
    %c0_i32_0 = arith.constant 0 : i32
    %c0_i32_1 = arith.constant 0 : i32
    return %c0_i32, %c0_i32_0 : i32, i32
  }
  func.func @transform_4(%arg0: i32) -> (i32, i32) {
    %c0_i32 = arith.constant 0 : i32
    %c0_i32_0 = arith.constant 0 : i32
    %c0_i32_1 = arith.constant 0 : i32
    return %c0_i32, %c0_i32_0 : i32, i32
  }
  func.func @transform_5(%arg0: i32) -> (i32, i32) {
    %c0_i32 = arith.constant 0 : i32
    %c0_i32_0 = arith.constant 0 : i32
    %c0_i32_1 = arith.constant 0 : i32
    return %c0_i32, %c0_i32_0 : i32, i32
  }
  func.func @transform_6(%arg0: i32) -> (i32, i32) {
    %c0_i32 = arith.constant 0 : i32
    %c0_i32_0 = arith.constant 0 : i32
    %c0_i32_1 = arith.constant 0 : i32
    return %c0_i32, %c0_i32_0 : i32, i32
  }
  func.func @transform_7(%arg0: i32) -> (i32, i32) {
    %c0_i32 = arith.constant 0 : i32
    %c0_i32_0 = arith.constant 0 : i32
    return %arg0, %c0_i32 : i32, i32
  }
}

</mosaic_0001>

<llo_original>
// kernel: tpu_custom_call.1
$region0: #{tpu_custom_call.1}
  #allocation0 [shape = 'u32[]', space=smem, size = 0x4, offset = 0x4, fixed_abs, tag = 'smem constant byte address 0x4 - core index']
  #allocation1 [shape = 'u32[144,128]{1,0:T(1,128)}', space=vmem, size = 0x12000, scoped, tag = 'internal scratch']
  #allocation2 [shape = 'f32[1,1]{1,0:T(1,128)S(1)}', space=vmem, size = 0x200, scoped, tag = 'scoped memory for tpu_custom_call.1']
  %s0 = inlined_call_operand.hbm [shape: f32[8,32], index: 0, kind: input, shape index: {}]
  %s1 = inlined_call_operand.hbm [shape: f32[32,64], index: 1, kind: input, shape index: {}]
  %s2 = inlined_call_operand.vmem [shape: f32[1,64], index: 2, kind: input, shape index: {}]
  %s3 = inlined_call_operand.hbm [shape: f32[64,64], index: 3, kind: input, shape index: {}]
  %s4 = inlined_call_operand.vmem [shape: f32[1,64], index: 4, kind: input, shape index: {}]
  %s5 = inlined_call_operand.vmem [shape: f32[1,64], index: 5, kind: input, shape index: {}]
  %s6 = inlined_call_operand.<no memory space> [shape: f32[1,1], index: 6, kind: input, shape index: {}]
  %s7 = inlined_call_operand.hbm [shape: f32[8,128], index: 7, kind: output, shape index: {}]
  %s8 = sld [smem:[#allocation0]]
  $region50: #{tpu_custom_call.1} parent=0
    _
  %s10 = ssub.s32 1, %s8
  %s11 = scalar_select 0, %s10, %s8
  %v12 = vstv %s6
  %13 = vst [vmem:[#allocation2] sm:$0x1] %v12
  $region1: #{tpu_custom_call.1} parent=0
    #allocation3 [shape = 'u8[4096]{0}', space=vmem, size = 0x1000, scoped, tag = 'input window, operand 0, single buffered']
    #allocation4 [shape = 's32[1]{0}', space=sflag, size = 0x4, scoped, tag = 'scoped memory for tpu_custom_call.1']
    #allocation5 [shape = 's32[1]{0}', space=sflag, size = 0x4, scoped, tag = 'scoped memory for tpu_custom_call.1']
    #allocation6 [shape = 'u8[16384]{0}', space=vmem, size = 0x4000, scoped, tag = 'input window, operand 1, single buffered']
    #allocation7 [shape = 's32[1]{0}', space=sflag, size = 0x4, scoped, tag = 'scoped memory for tpu_custom_call.1']
    #allocation8 [shape = 'u8[32768]{0}', space=vmem, size = 0x8000, scoped, tag = 'input window, operand 3, single buffered']
    #allocation9 [shape = 'u8[4096]{0}', space=vmem, size = 0x1000, scoped, tag = 'output window, operand 0, single buffered']
    %14 = vsyncpa [#allocation4], 0
    %15 = vsyncpa [#allocation7], 0
    %16 = vsyncpa [#allocation5], 0
    // Predicated region
    $region2: #{tpu_custom_call.1} parent=1 // pred_check
      _
    $region3: #{tpu_custom_call.1} parent=1 // pred_check_branch
      %18 = sbr.rel (0) target = $region5
    $region4: #{tpu_custom_call.1} parent=1 // pred_region
      %s20 = ssub.s32 128, 128
      %21 = vsyncadd [#allocation4], %s20
      %s23 = sshll.u32 [#allocation3], 4
      %s24 = int_to_ptr.vmem [resolvable:$true] %s23
      %26 = dma.hbm_to_vmem [thread:$0]  %s0, 128, %s24, [#allocation4]
    $region5: #{tpu_custom_call.1} parent=1 // pred_fallthru
      _
    // Predicated region
    $region6: #{tpu_custom_call.1} parent=1 // pred_check
      _
    $region7: #{tpu_custom_call.1} parent=1 // pred_check_branch
      %28 = sbr.rel (0) target = $region9
    $region8: #{tpu_custom_call.1} parent=1 // pred_region
      %s30 = ssub.s32 512, 512
      %31 = vsyncadd [#allocation7], %s30
      %s32 = sshll.u32 [#allocation6], 4
      %s33 = int_to_ptr.vmem [resolvable:$true] %s32
      %38 = dma.hbm_to_vmem [thread:$0]  %s1, 512, %s33, [#allocation7], 128, 128, 8
    $region9: #{tpu_custom_call.1} parent=1 // pred_fallthru
      _
    // Predicated region
    $region10: #{tpu_custom_call.1} parent=1 // pred_check
      _
    $region11: #{tpu_custom_call.1} parent=1 // pred_check_branch
      %40 = sbr.rel (0) target = $region13
    $region12: #{tpu_custom_call.1} parent=1 // pred_region
      _
    $region13: #{tpu_custom_call.1} parent=1 // pred_fallthru
      _
    // Predicated region
    $region14: #{tpu_custom_call.1} parent=1 // pred_check
      _
    $region15: #{tpu_custom_call.1} parent=1 // pred_check_branch
      %42 = sbr.rel (0) target = $region17
    $region16: #{tpu_custom_call.1} parent=1 // pred_region
      %s44 = ssub.s32 1024, 1024
      %45 = vsyncadd [#allocation7], %s44
      %s46 = sshll.u32 [#allocation8], 4
      %s47 = int_to_ptr.vmem [resolvable:$true] %s46
      %52 = dma.hbm_to_vmem [thread:$0]  %s3, 1024, %s47, [#allocation7], 128, 128, 8
    $region17: #{tpu_custom_call.1} parent=1 // pred_fallthru
      _
    // Predicated region
    $region18: #{tpu_custom_call.1} parent=1 // pred_check
      _
    $region19: #{tpu_custom_call.1} parent=1 // pred_check_branch
      %54 = sbr.rel (0) target = $region21
    $region20: #{tpu_custom_call.1} parent=1 // pred_region
      _
    $region21: #{tpu_custom_call.1} parent=1 // pred_fallthru
      _
    // Predicated region
    $region22: #{tpu_custom_call.1} parent=1 // pred_check
      _
    $region23: #{tpu_custom_call.1} parent=1 // pred_check_branch
      %56 = sbr.rel (0) target = $region25
    $region24: #{tpu_custom_call.1} parent=1 // pred_region
      _
    $region25: #{tpu_custom_call.1} parent=1 // pred_fallthru
      _
    // Predicated region
    $region26: #{tpu_custom_call.1} parent=1 // pred_check
      _
    $region27: #{tpu_custom_call.1} parent=1 // pred_check_branch
      %58 = sbr.rel (0) target = $region29
    $region28: #{tpu_custom_call.1} parent=1 // pred_region
      _
    $region29: #{tpu_custom_call.1} parent=1 // pred_fallthru
      _
    // Predicated region
    $region30: #{tpu_custom_call.1} parent=1 // pred_check
      _
    $region31: #{tpu_custom_call.1} parent=1 // pred_check_branch
      %60 = sbr.rel (0) target = $region33
    $region32: #{tpu_custom_call.1} parent=1 // pred_region
      %61 = dma.done [#allocation4], 128
    $region33: #{tpu_custom_call.1} parent=1 // pred_fallthru
      _
    // Predicated region
    $region34: #{tpu_custom_call.1} parent=1 // pred_check
      _
    $region35: #{tpu_custom_call.1} parent=1 // pred_check_branch
      %63 = sbr.rel (0) target = $region37
    $region36: #{tpu_custom_call.1} parent=1 // pred_region
      %64 = dma.done [#allocation7], 512
    $region37: #{tpu_custom_call.1} parent=1 // pred_fallthru
      _
    // Predicated region
    $region38: #{tpu_custom_call.1} parent=1 // pred_check
      _
    $region39: #{tpu_custom_call.1} parent=1 // pred_check_branch
      %66 = sbr.rel (0) target = $region41
    $region40: #{tpu_custom_call.1} parent=1 // pred_region
      %67 = dma.done [#allocation7], 1024
    $region41: #{tpu_custom_call.1} parent=1 // pred_fallthru
      _
    %v68 = vld [vmem:[#allocation3] sm:$0xff]
    %v69 = vld [vmem:[#allocation6] sm:$0xff]
    %v70 = vld [vmem:[#allocation6 + $0x8] sm:$0xff]
    %v71 = vld [vmem:[#allocation6 + $0x10] sm:$0xff]
    %v72 = vld [vmem:[#allocation6 + $0x18] sm:$0xff]
    %v73 = vld [vmem:[%s2] sm:$0x1]
    %v75 = vlaneseq
    %v76 = vshrl.u32 %v75, 7
    %v77 = vsub.s32 0, %v76
    %v78 = vrot.slane %v73, %v77
    %vm80 = vcmask 261120
    %v82 = vsel %vm80, %v68, 0
    %84 = vmatprep.subr.mxu0 0.0
    %85 = vmatpush1.msra.mxu0 %v69
    %86 = vmatprep.subr.mxu0 0.0
    %87 = vmatpush1.msra.mxu0 %v70
    %88 = vmatprep.subr.mxu0 0.0
    %89 = vmatpush1.msra.mxu0 %v71
    %90 = vmatprep.subr.mxu0 0.0
    %91 = vmatpush1.msra.mxu0 %v72
    %92 = vmatprep.subr.mxu0 0.0
    %93 = vmatpush1.msra.mxu0 0.0
    %94 = vmatprep.subr.mxu0 0.0
    %95 = vmatpush1.msra.mxu0 0.0
    %96 = vmatprep.subr.mxu0 0.0
    %97 = vmatpush1.msra.mxu0 0.0
    %98 = vmatprep.subr.mxu0 0.0
    %99 = vmatpush1.msra.mxu0 0.0
    %100 = vmatprep.subr.mxu0 0.0
    %101 = vmatpush1.msra.mxu0 0.0
    %102 = vmatprep.subr.mxu0 0.0
    %103 = vmatpush1.msra.mxu0 0.0
    %104 = vmatprep.subr.mxu0 0.0
    %105 = vmatpush1.msra.mxu0 0.0
    %106 = vmatprep.subr.mxu0 0.0
    %107 = vmatpush1.msra.mxu0 0.0
    %108 = vmatprep.subr.mxu0 0.0
    %109 = vmatpush1.msra.mxu0 0.0
    %110 = vmatprep.subr.mxu0 0.0
    %111 = vmatpush1.msra.mxu0 0.0
    %112 = vmatprep.subr.mxu0 0.0
    %113 = vmatpush1.msra.mxu0 0.0
    %114 = vmatprep.subr.mxu0 0.0
    %115 = vmatpush1.msra.mxu0 0.0
    %116 = vmatprep.subr.mxu0 0.0
    %117 = vmatpush1.msra.mxu0 0.0
    %118 = vmatprep.subr.mxu0 0.0
    %119 = vmatpush1.msra.mxu0 0.0
    %120 = vmatprep.subr.mxu0 0.0
    %121 = vmatpush1.msra.mxu0 0.0
    %122 = vmatprep.subr.mxu0 0.0
    %123 = vmatpush1.msra.mxu0 0.0
    %124 = vmatprep.subr.mxu0 0.0
    %125 = vmatpush1.msra.mxu0 0.0
    %126 = vmatprep.subr.mxu0 0.0
    %127 = vmatpush1.msra.mxu0 0.0
    %128 = vmatprep.subr.mxu0 0.0
    %129 = vmatpush1.msra.mxu0 0.0
    %130 = vmatprep.subr.mxu0 0.0
    %131 = vmatpush1.msra.mxu0 0.0
    %132 = vmatprep.subr.mxu0 0.0
    %133 = vmatpush1.msra.mxu0 0.0
    %134 = vmatprep.subr.mxu0 0.0
    %135 = vmatpush1.msra.mxu0 0.0
    %136 = vmatprep.subr.mxu0 0.0
    %137 = vmatpush1.msra.mxu0 0.0
    %138 = vmatprep.subr.mxu0 0.0
    %139 = vmatpush1.msra.mxu0 0.0
    %140 = vmatprep.subr.mxu0 0.0
    %141 = vmatpush1.msra.mxu0 0.0
    %142 = vmatprep.subr.mxu0 0.0
    %143 = vmatpush1.msra.mxu0 0.0
    %144 = vmatprep.subr.mxu0 0.0
    %145 = vmatpush1.msra.mxu0 0.0
    %146 = vmatprep.subr.mxu0 0.0
    %147 = vmatpush1.msra.mxu0 0.0
    %148 = vmatprep.mubr.f32.mxu0 0.0
    %149 = vmatmul.mubr.f32.gmra.mrb[0].mxu0 %v82
    %v150 = vpop.f32.mrb[0].mxu0
    %v151 = vadd.f32 %v78, %v150
    %v152 = vpop.f32.mrb[0].mxu0
    %153 = vdwg.mxu0
    %v154 = vtanh.pop %v151
    %v155 = vld [vmem:[#allocation8] sm:$0xff]
    %v156 = vld [vmem:[#allocation8 + $0x8] sm:$0xff]
    %v157 = vld [vmem:[#allocation8 + $0x10] sm:$0xff]
    %v158 = vld [vmem:[#allocation8 + $0x18] sm:$0xff]
    %v159 = vld [vmem:[#allocation8 + $0x20] sm:$0xff]
    %v160 = vld [vmem:[#allocation8 + $0x28] sm:$0xff]
    %v161 = vld [vmem:[#allocation8 + $0x30] sm:$0xff]
    %v162 = vld [vmem:[#allocation8 + $0x38] sm:$0xff]
    %v163 = vld [vmem:[%s4] sm:$0x1]
    %v165 = vlaneseq
    %v166 = vshrl.u32 %v165, 7
    %v167 = vsub.s32 0, %v166
    %v168 = vrot.slane %v163, %v167
    %vm170 = vcmask 523264
    %v172 = vsel %vm170, %v154, 0
    %174 = vmatprep.subr.mxu0 0.0
    %175 = vmatpush1.msra.mxu0 %v155
    %176 = vmatprep.subr.mxu0 0.0
    %177 = vmatpush1.msra.mxu0 %v156
    %178 = vmatprep.subr.mxu0 0.0
    %179 = vmatpush1.msra.mxu0 %v157
    %180 = vmatprep.subr.mxu0 0.0
    %181 = vmatpush1.msra.mxu0 %v158
    %182 = vmatprep.subr.mxu0 0.0
    %183 = vmatpush1.msra.mxu0 %v159
    %184 = vmatprep.subr.mxu0 0.0
    %185 = vmatpush1.msra.mxu0 %v160
    %186 = vmatprep.subr.mxu0 0.0
    %187 = vmatpush1.msra.mxu0 %v161
    %188 = vmatprep.subr.mxu0 0.0
    %189 = vmatpush1.msra.mxu0 %v162
    %190 = vmatprep.subr.mxu0 0.0
    %191 = vmatpush1.msra.mxu0 0.0
    %192 = vmatprep.subr.mxu0 0.0
    %193 = vmatpush1.msra.mxu0 0.0
    %194 = vmatprep.subr.mxu0 0.0
    %195 = vmatpush1.msra.mxu0 0.0
    %196 = vmatprep.subr.mxu0 0.0
    %197 = vmatpush1.msra.mxu0 0.0
    %198 = vmatprep.subr.mxu0 0.0
    %199 = vmatpush1.msra.mxu0 0.0
    %200 = vmatprep.subr.mxu0 0.0
    %201 = vmatpush1.msra.mxu0 0.0
    %202 = vmatprep.subr.mxu0 0.0
    %203 = vmatpush1.msra.mxu0 0.0
    %204 = vmatprep.subr.mxu0 0.0
    %205 = vmatpush1.msra.mxu0 0.0
    %206 = vmatprep.subr.mxu0 0.0
    %207 = vmatpush1.msra.mxu0 0.0
    %208 = vmatprep.subr.mxu0 0.0
    %209 = vmatpush1.msra.mxu0 0.0
    %210 = vmatprep.subr.mxu0 0.0
    %211 = vmatpush1.msra.mxu0 0.0
    %212 = vmatprep.subr.mxu0 0.0
    %213 = vmatpush1.msra.mxu0 0.0
    %214 = vmatprep.subr.mxu0 0.0
    %215 = vmatpush1.msra.mxu0 0.0
    %216 = vmatprep.subr.mxu0 0.0
    %217 = vmatpush1.msra.mxu0 0.0
    %218 = vmatprep.subr.mxu0 0.0
    %219 = vmatpush1.msra.mxu0 0.0
    %220 = vmatprep.subr.mxu0 0.0
    %221 = vmatpush1.msra.mxu0 0.0
    %222 = vmatprep.subr.mxu0 0.0
    %223 = vmatpush1.msra.mxu0 0.0
    %224 = vmatprep.subr.mxu0 0.0
    %225 = vmatpush1.msra.mxu0 0.0
    %226 = vmatprep.subr.mxu0 0.0
    %227 = vmatpush1.msra.mxu0 0.0
    %228 = vmatprep.subr.mxu0 0.0
    %229 = vmatpush1.msra.mxu0 0.0
    %230 = vmatprep.subr.mxu0 0.0
    %231 = vmatpush1.msra.mxu0 0.0
    %232 = vmatprep.subr.mxu0 0.0
    %233 = vmatpush1.msra.mxu0 0.0
    %234 = vmatprep.subr.mxu0 0.0
    %235 = vmatpush1.msra.mxu0 0.0
    %236 = vmatprep.subr.mxu0 0.0
    %237 = vmatpush1.msra.mxu0 0.0
    %238 = vmatprep.mubr.f32.mxu0 0.0
    %239 = vmatmul.mubr.f32.gmra.mrb[0].mxu0 %v172
    %v240 = vpop.f32.mrb[0].mxu0
    %v241 = vadd.f32 %v168, %v240
    %v242 = vpop.f32.mrb[0].mxu0
    %243 = vdwg.mxu0
    %v244 = vtanh.pop %v241
    %v245 = vld [vmem:[%s5] sm:$0x1]
    %v247 = vlaneseq
    %v248 = vshrl.u32 %v247, 7
    %v249 = vsub.s32 0, %v248
    %v250 = vrot.slane %v245, %v249
    %v252 = vmul.f32 %v244, %v250
    %v253 = vsel %vm170, %v252, 0.0
    %254 = vadd.xlane.f32.xlu0 %v253
    %v255 = vpop.xlane.xlu0 %254
    %v256 = vld [vmem:[#allocation2] sm:$0x1]
    %v258 = vlaneseq
    %v259 = vshrl.u32 %v258, 7
    %v260 = vsub.s32 0, %v259
    %v261 = vrot.slane %v256, %v260
    %v263 = vadd.f32 %v255, %v261
    %265 = vset.pattern.permute.xlu0 0
    %266 = vperm.xlu0 %265, %v263
    %v267 = vpop.permute.xlu0 %266
    %v269 = vsel %vm80, %v244, %v267
    %270 = vst [vmem:[#allocation9] sm:$0xff] %v269
    // Predicated region
    $region42: #{tpu_custom_call.1} parent=1 // pred_check
      _
    $region43: #{tpu_custom_call.1} parent=1 // pred_check_branch
      %272 = sbr.rel (0) target = $region45
    $region44: #{tpu_custom_call.1} parent=1 // pred_region
      %s274 = ssub.s32 128, 128
      %275 = vsyncadd [#allocation5], %s274
      %s277 = sshll.u32 [#allocation9], 4
      %s278 = int_to_ptr.vmem [resolvable:$true] %s277
      %280 = dma.vmem_to_hbm [thread:$0]  %s278, 128, %s7, [#allocation5]
    $region45: #{tpu_custom_call.1} parent=1 // pred_fallthru
      _
    // Predicated region
    $region46: #{tpu_custom_call.1} parent=1 // pred_check
      _
    $region47: #{tpu_custom_call.1} parent=1 // pred_check_branch
      %282 = sbr.rel (0) target = $region49
    $region48: #{tpu_custom_call.1} parent=1 // pred_region
      %283 = dma.done [#allocation5], 128
    $region49: #{tpu_custom_call.1} parent=1 // pred_fallthru
      _
    %284 = vsyncpa [#allocation4], 1
    %285 = vsyncpa [#allocation7], 1
    %286 = vsyncpa [#allocation5], 1

</llo_original>
